<compile_context>
chip_gen: v6e
topology: v6e:2x2x1
jax: 0.10.0
libtpu: 0.0.40
codegen_flags: <defaults>
</compile_context>

<pallas_src>
import jax
import jax.numpy as jnp
from jax.experimental import pallas as pl
from jax.experimental.pallas import tpu as pltpu  # noqa: F401  (TPU backend)


def _kantorovich_kernel(x_ref, w1_ref, b1_ref, w2_ref, b2_ref, o_ref):
    # Everything is VMEM-resident; one invocation, no grid steps.
    x = x_ref[...]        # (E, B, D)
    w1 = w1_ref[...]      # (E, D, D)
    b1 = b1_ref[...]      # (E, 1, D)
    w2 = w2_ref[...]      # (E, D)   fc2 weight column, lane-major
    b2 = b2_ref[...]      # (E, 1)

    # fc1: batched matmul on the MXU (f32 accumulation), bias + ReLU on the VPU.
    h = jnp.einsum("ebd,edf->ebf", x, w1, preferred_element_type=jnp.float32)
    h = jnp.maximum(h + b1, 0.0)

    # fc2 (output_size == 1): a D x 1 RHS would leave 127/128 MXU lanes dead,
    # so use a VPU multiply + lane reduction instead. Result is lane-dense (E, B).
    o = jnp.sum(h * w2[:, None, :], axis=-1) + b2
    o_ref[...] = o.astype(o_ref.dtype)


def kantorovich_forward(x, w1, b1, w2, b2):
    """Ensemble (>1) forward, matching torch.baddbmm semantics.

    x: (E, B, D); w1: (E, D, D); b1: (E, 1, D); w2: (E, D, 1); b2: (E, 1, 1).
    Returns (E, B, 1).
    """
    E, B, D = x.shape
    O = w2.shape[-1]
    # TODO(synk): output_size > 1 would need a batched dot for fc2; the module
    # default (and this kernel) is output_size == 1.
    assert O == 1, "kernel specialised for output_size == 1"

    w2_vec = w2.reshape(E, D)   # drop the size-1 output column -> lane vector
    b2_vec = b2.reshape(E, 1)

    out = pl.pallas_call(
        _kantorovich_kernel,
        out_shape=jax.ShapeDtypeStruct((E, B), jnp.float32),
    )(x, w1, b1, w2_vec, b2_vec)

    return out.reshape(E, B, O).astype(x.dtype)


def kantorovich_forward_single(x, w1, b1, w2, b2):
    """ensemble == 1 branch (plain nn.Linear weight layout: W is (out, in)).

    x: (B, D); w1: (D, D); b1: (D,); w2: (1, D); b2: (1,).  Returns (B, 1).
    """
    return kantorovich_forward(
        x[None],
        jnp.swapaxes(w1, 0, 1)[None],   # nn.Linear applies x @ W.T
        b1[None, None],
        jnp.swapaxes(w2, 0, 1)[None],
        b2[None, None],
    )[0]


if __name__ == "__main__":
    # Small shapes consistent with the module: ensemble=4, batch=8,
    # embeddings_size=64, output_size=1.
    E, B, D, O = 4, 8, 64, 1
    key = jax.random.PRNGKey(0)
    kx, kw1, kb1, kw2, kb2 = jax.random.split(key, 5)

    x = jax.random.normal(kx, (E, B, D), dtype=jnp.float32)
    w1 = jax.random.normal(kw1, (E, D, D), dtype=jnp.float32) * 0.1
    b1 = jax.random.normal(kb1, (E, 1, D), dtype=jnp.float32) * 0.1
    w2 = jax.random.normal(kw2, (E, D, O), dtype=jnp.float32) * 0.1
    b2 = jax.random.normal(kb2, (E, 1, O), dtype=jnp.float32) * 0.1

    out = kantorovich_forward(x, w1, b1, w2, b2)
    jax.block_until_ready(out)

    h_ref = jnp.maximum(jnp.einsum("ebd,edf->ebf", x, w1) + b1, 0.0)
    ref = jnp.einsum("ebd,edo->ebo", h_ref, w2) + b2
    assert out.shape == (E, B, O)
    assert jnp.allclose(out, ref, atol=1e-4, rtol=1e-4)

    # ensemble == 1 branch (plain nn.Linear layout), reusing the same kernel.
    ks = jax.random.split(jax.random.PRNGKey(1), 5)
    xs = jax.random.normal(ks[0], (B, D), dtype=jnp.float32)
    W1 = jax.random.normal(ks[1], (D, D), dtype=jnp.float32) * 0.1
    B1 = jax.random.normal(ks[2], (D,), dtype=jnp.float32) * 0.1
    W2 = jax.random.normal(ks[3], (O, D), dtype=jnp.float32) * 0.1
    B2 = jax.random.normal(ks[4], (O,), dtype=jnp.float32) * 0.1

    out1 = kantorovich_forward_single(xs, W1, B1, W2, B2)
    jax.block_until_ready(out1)
    ref1 = jnp.maximum(xs @ W1.T + B1, 0.0) @ W2.T + B2
    assert out1.shape == (B, O)
    assert jnp.allclose(out1, ref1, atol=1e-4, rtol=1e-4)

    print("KERNEL_OK")
</pallas_src>

<mosaic_0001>
module attributes {stable_mosaic.version = 11 : i64} {
  func.func @_kantorovich_kernel(%arg0: memref<4x8x64xf32, #tpu.memory_space<vmem>>, %arg1: memref<4x64x64xf32, #tpu.memory_space<vmem>>, %arg2: memref<4x1x64xf32, #tpu.memory_space<vmem>>, %arg3: memref<4x64xf32, #tpu.memory_space<vmem>>, %arg4: memref<4x1xf32, #tpu.memory_space<vmem>>, %arg5: memref<4x8xf32, #tpu.memory_space<vmem>>) attributes {dimension_semantics = [], scalar_prefetch = 0 : i64, scratch_operands = 0 : i64, tpu.core_type = #tpu.core_type<tc>} {
    %c0 = arith.constant 0 : index
    %c0_0 = arith.constant 0 : index
    %c0_1 = arith.constant 0 : index
    %0 = vector.load %arg0[%c0, %c0_0, %c0_1] : memref<4x8x64xf32, #tpu.memory_space<vmem>>, vector<4x8x64xf32>
    %c0_2 = arith.constant 0 : index
    %c0_3 = arith.constant 0 : index
    %c0_4 = arith.constant 0 : index
    %1 = vector.load %arg1[%c0_2, %c0_3, %c0_4] : memref<4x64x64xf32, #tpu.memory_space<vmem>>, vector<4x64x64xf32>
    %c0_5 = arith.constant 0 : index
    %c0_6 = arith.constant 0 : index
    %c0_7 = arith.constant 0 : index
    %2 = vector.load %arg2[%c0_5, %c0_6, %c0_7] : memref<4x1x64xf32, #tpu.memory_space<vmem>>, vector<4x1x64xf32>
    %c0_8 = arith.constant 0 : index
    %c0_9 = arith.constant 0 : index
    %3 = vector.load %arg3[%c0_8, %c0_9] : memref<4x64xf32, #tpu.memory_space<vmem>>, vector<4x64xf32>
    %c0_10 = arith.constant 0 : index
    %c0_11 = arith.constant 0 : index
    %4 = vector.load %arg4[%c0_10, %c0_11] : memref<4x1xf32, #tpu.memory_space<vmem>>, vector<4x1xf32>
    "tpu.trace_start"() <{level = 10 : i32, message = "ebd,edf->ebf"}> : () -> ()
    %cst = arith.constant dense<0.000000e+00> : vector<4x8x64xf32>
    %5 = tpu.matmul %0, %1, %cst {dimension_numbers = #tpu.dot_dimension_numbers<[2], [1], [1], [2], [0, 0, 0, 1, 1, 2], [0], [0]>} : vector<4x8x64xf32>, vector<4x64x64xf32>, vector<4x8x64xf32> -> vector<4x8x64xf32>
    "tpu.trace_stop"() : () -> ()
    %6 = vector.broadcast %2 : vector<4x1x64xf32> to vector<4x8x64xf32>
    %7 = arith.addf %5, %6 : vector<4x8x64xf32>
    %cst_12 = arith.constant 0.000000e+00 : f32
    %8 = vector.broadcast %cst_12 : f32 to vector<4x8x64xf32>
    %9 = arith.maximumf %7, %8 : vector<4x8x64xf32>
    %10 = vector.shape_cast %3 : vector<4x64xf32> to vector<4x1x64xf32>
    %11 = vector.broadcast %10 : vector<4x1x64xf32> to vector<4x8x64xf32>
    %12 = arith.mulf %9, %11 : vector<4x8x64xf32>
    %cst_13 = arith.constant dense<0.000000e+00> : vector<4x8xf32>
    %13 = vector.multi_reduction <add>, %12, %cst_13 [2] : vector<4x8x64xf32> to vector<4x8xf32>
    %14 = vector.broadcast %4 : vector<4x1xf32> to vector<4x8xf32>
    %15 = arith.addf %13, %14 : vector<4x8xf32>
    %c0_14 = arith.constant 0 : index
    %c0_15 = arith.constant 0 : index
    %16 = vector.load %arg5[%c0_14, %c0_15] : memref<4x8xf32, #tpu.memory_space<vmem>>, vector<4x8xf32>
    tpu.vector_store %arg5[%c0_14, %c0_15], %15 {strides = array<i32>} : memref<4x8xf32, #tpu.memory_space<vmem>>, vector<4x8xf32>,
    return
  }
}

</mosaic_0001>

<llo_original>
// kernel: tpu_custom_call.1
$region0: #{tpu_custom_call.1}
  #allocation0 [shape = 'u32[]', space=smem, size = 0x4, offset = 0x4, fixed_abs, tag = 'smem constant byte address 0x4 - core index']
  #allocation1 [shape = 'u32[144,128]{1,0:T(1,128)}', space=vmem, size = 0x12000, scoped, tag = 'internal scratch']
  %s0 = inlined_call_operand.hbm [shape: f32[4,8,64], index: 0, kind: input, shape index: {}]
  %s1 = inlined_call_operand.hbm [shape: f32[4,64,64], index: 1, kind: input, shape index: {}]
  %s2 = inlined_call_operand.vmem [shape: f32[4,1,64], index: 2, kind: input, shape index: {}]
  %s3 = inlined_call_operand.vmem [shape: f32[4,64], index: 3, kind: input, shape index: {}]
  %s4 = inlined_call_operand.vmem [shape: f32[4,1], index: 4, kind: input, shape index: {}]
  %s5 = inlined_call_operand.hbm [shape: f32[4,8], index: 5, kind: output, shape index: {}]
  %s6 = sld [smem:[#allocation0]]
  $region38: #{tpu_custom_call.1} parent=0
    _
  %s8 = ssub.s32 1, %s6
  %s9 = scalar_select 0, %s8, %s6
  $region1: #{tpu_custom_call.1} parent=0
    #allocation2 [shape = 'u8[16384]{0}', space=vmem, size = 0x4000, scoped, tag = 'input window, operand 0, single buffered']
    #allocation3 [shape = 's32[1]{0}', space=sflag, size = 0x4, scoped, tag = 'scoped memory for tpu_custom_call.1']
    #allocation4 [shape = 's32[1]{0}', space=sflag, size = 0x4, scoped, tag = 'scoped memory for tpu_custom_call.1']
    #allocation5 [shape = 'u8[131072]{0}', space=vmem, size = 0x20000, scoped, tag = 'input window, operand 1, single buffered']
    #allocation6 [shape = 's32[1]{0}', space=sflag, size = 0x4, scoped, tag = 'scoped memory for tpu_custom_call.1']
    #allocation7 [shape = 'u8[2048]{0}', space=vmem, size = 0x800, scoped, tag = 'output window, operand 0, single buffered']
    %10 = vsyncpa [#allocation3], 0
    %11 = vsyncpa [#allocation6], 0
    %12 = vsyncpa [#allocation4], 0
    // Predicated region
    $region2: #{tpu_custom_call.1} parent=1 // pred_check
      _
    $region3: #{tpu_custom_call.1} parent=1 // pred_check_branch
      %14 = sbr.rel (0) target = $region5
    $region4: #{tpu_custom_call.1} parent=1 // pred_region
      %s16 = ssub.s32 512, 512
      %17 = vsyncadd [#allocation3], %s16
      %s18 = sshll.u32 [#allocation2], 4
      %s19 = int_to_ptr.vmem [resolvable:$true] %s18
      %24 = dma.hbm_to_vmem [thread:$0]  %s0, 512, %s19, [#allocation3], 128, 128, 8
    $region5: #{tpu_custom_call.1} parent=1 // pred_fallthru
      _
    // Predicated region
    $region6: #{tpu_custom_call.1} parent=1 // pred_check
      _
    $region7: #{tpu_custom_call.1} parent=1 // pred_check_branch
      %26 = sbr.rel (0) target = $region9
    $region8: #{tpu_custom_call.1} parent=1 // pred_region
      %s28 = ssub.s32 4096, 4096
      %29 = vsyncadd [#allocation6], %s28
      %s30 = sshll.u32 [#allocation5], 4
      %s31 = int_to_ptr.vmem [resolvable:$true] %s30
      %36 = dma.hbm_to_vmem [thread:$0]  %s1, 4096, %s31, [#allocation6], 128, 128, 8
    $region9: #{tpu_custom_call.1} parent=1 // pred_fallthru
      _
    // Predicated region
    $region10: #{tpu_custom_call.1} parent=1 // pred_check
      _
    $region11: #{tpu_custom_call.1} parent=1 // pred_check_branch
      %38 = sbr.rel (0) target = $region13
    $region12: #{tpu_custom_call.1} parent=1 // pred_region
      _
    $region13: #{tpu_custom_call.1} parent=1 // pred_fallthru
      _
    // Predicated region
    $region14: #{tpu_custom_call.1} parent=1 // pred_check
      _
    $region15: #{tpu_custom_call.1} parent=1 // pred_check_branch
      %40 = sbr.rel (0) target = $region17
    $region16: #{tpu_custom_call.1} parent=1 // pred_region
      _
    $region17: #{tpu_custom_call.1} parent=1 // pred_fallthru
      _
    // Predicated region
    $region18: #{tpu_custom_call.1} parent=1 // pred_check
      _
    $region19: #{tpu_custom_call.1} parent=1 // pred_check_branch
      %42 = sbr.rel (0) target = $region21
    $region20: #{tpu_custom_call.1} parent=1 // pred_region
      _
    $region21: #{tpu_custom_call.1} parent=1 // pred_fallthru
      _
    // Predicated region
    $region22: #{tpu_custom_call.1} parent=1 // pred_check
      _
    $region23: #{tpu_custom_call.1} parent=1 // pred_check_branch
      %44 = sbr.rel (0) target = $region25
    $region24: #{tpu_custom_call.1} parent=1 // pred_region
      %45 = dma.done [#allocation3], 512
    $region25: #{tpu_custom_call.1} parent=1 // pred_fallthru
      _
    // Predicated region
    $region26: #{tpu_custom_call.1} parent=1 // pred_check
      _
    $region27: #{tpu_custom_call.1} parent=1 // pred_check_branch
      %47 = sbr.rel (0) target = $region29
    $region28: #{tpu_custom_call.1} parent=1 // pred_region
      %48 = dma.done [#allocation6], 4096
    $region29: #{tpu_custom_call.1} parent=1 // pred_fallthru
      _
    %v49 = vld [vmem:[#allocation2] sm:$0xff]
    %v50 = vld [vmem:[#allocation2 + $0x8] sm:$0xff]
    %v51 = vld [vmem:[#allocation2 + $0x10] sm:$0xff]
    %v52 = vld [vmem:[#allocation2 + $0x18] sm:$0xff]
    %v53 = vld [vmem:[#allocation5] sm:$0xff]
    %v54 = vld [vmem:[#allocation5 + $0x8] sm:$0xff]
    %v55 = vld [vmem:[#allocation5 + $0x10] sm:$0xff]
    %v56 = vld [vmem:[#allocation5 + $0x18] sm:$0xff]
    %v57 = vld [vmem:[#allocation5 + $0x20] sm:$0xff]
    %v58 = vld [vmem:[#allocation5 + $0x28] sm:$0xff]
    %v59 = vld [vmem:[#allocation5 + $0x30] sm:$0xff]
    %v60 = vld [vmem:[#allocation5 + $0x38] sm:$0xff]
    %v61 = vld [vmem:[#allocation5 + $0x40] sm:$0xff]
    %v62 = vld [vmem:[#allocation5 + $0x48] sm:$0xff]
    %v63 = vld [vmem:[#allocation5 + $0x50] sm:$0xff]
    %v64 = vld [vmem:[#allocation5 + $0x58] sm:$0xff]
    %v65 = vld [vmem:[#allocation5 + $0x60] sm:$0xff]
    %v66 = vld [vmem:[#allocation5 + $0x68] sm:$0xff]
    %v67 = vld [vmem:[#allocation5 + $0x70] sm:$0xff]
    %v68 = vld [vmem:[#allocation5 + $0x78] sm:$0xff]
    %v69 = vld [vmem:[#allocation5 + $0x80] sm:$0xff]
    %v70 = vld [vmem:[#allocation5 + $0x88] sm:$0xff]
    %v71 = vld [vmem:[#allocation5 + $0x90] sm:$0xff]
    %v72 = vld [vmem:[#allocation5 + $0x98] sm:$0xff]
    %v73 = vld [vmem:[#allocation5 + $0xa0] sm:$0xff]
    %v74 = vld [vmem:[#allocation5 + $0xa8] sm:$0xff]
    %v75 = vld [vmem:[#allocation5 + $0xb0] sm:$0xff]
    %v76 = vld [vmem:[#allocation5 + $0xb8] sm:$0xff]
    %v77 = vld [vmem:[#allocation5 + $0xc0] sm:$0xff]
    %v78 = vld [vmem:[#allocation5 + $0xc8] sm:$0xff]
    %v79 = vld [vmem:[#allocation5 + $0xd0] sm:$0xff]
    %v80 = vld [vmem:[#allocation5 + $0xd8] sm:$0xff]
    %v81 = vld [vmem:[#allocation5 + $0xe0] sm:$0xff]
    %v82 = vld [vmem:[#allocation5 + $0xe8] sm:$0xff]
    %v83 = vld [vmem:[#allocation5 + $0xf0] sm:$0xff]
    %v84 = vld [vmem:[#allocation5 + $0xf8] sm:$0xff]
    %v85 = vld [vmem:[%s2] sm:$0x1]
    %v86 = vld [vmem:[%s2 + $0x1] sm:$0x1]
    %v87 = vld [vmem:[%s2 + $0x2] sm:$0x1]
    %v88 = vld [vmem:[%s2 + $0x3] sm:$0x1]
    %v89 = vld [vmem:[%s3] sm:$0xf]
    %v90 = vld [vmem:[%s4] sm:$0xf]
    %v95 = vlaneseq
    %v96 = vshrl.u32 %v95, 7
    %v97 = vsub.s32 0, %v96
    %v98 = vrot.slane %v85, %v97
    %v99 = vlaneseq
    %v100 = vshrl.u32 %v99, 7
    %v101 = vsub.s32 0, %v100
    %v102 = vrot.slane %v86, %v101
    %v103 = vlaneseq
    %v104 = vshrl.u32 %v103, 7
    %v105 = vsub.s32 0, %v104
    %v106 = vrot.slane %v87, %v105
    %v107 = vlaneseq
    %v108 = vshrl.u32 %v107, 7
    %v109 = vsub.s32 0, %v108
    %v110 = vrot.slane %v88, %v109
    %vm115 = vcmask 523264
    %v117 = vsel %vm115, %v49, 0
    %119 = vmatprep.subr.mxu0 0.0
    %120 = vmatpush1.msra.mxu0 0.0
    %121 = vmatprep.subr.mxu0 0.0
    %122 = vmatpush1.msra.mxu0 0.0
    %123 = vmatprep.subr.mxu0 0.0
    %124 = vmatpush1.msra.mxu0 0.0
    %125 = vmatprep.subr.mxu0 0.0
    %126 = vmatpush1.msra.mxu0 0.0
    %127 = vmatprep.subr.mxu0 0.0
    %128 = vmatpush1.msra.mxu0 0.0
    %129 = vmatprep.subr.mxu0 0.0
    %130 = vmatpush1.msra.mxu0 0.0
    %131 = vmatprep.subr.mxu0 0.0
    %132 = vmatpush1.msra.mxu0 0.0
    %133 = vmatprep.subr.mxu0 0.0
    %134 = vmatpush1.msra.mxu0 0.0
    %135 = vmatprep.subr.mxu0 0.0
    %136 = vmatpush1.msra.mxu0 %v60
    %137 = vmatprep.subr.mxu0 0.0
    %138 = vmatpush1.msra.mxu0 %v59
    %139 = vmatprep.subr.mxu0 0.0
    %140 = vmatpush1.msra.mxu0 %v58
    %141 = vmatprep.subr.mxu0 0.0
    %142 = vmatpush1.msra.mxu0 %v57
    %143 = vmatprep.subr.mxu0 0.0
    %144 = vmatpush1.msra.mxu0 %v56
    %145 = vmatprep.subr.mxu0 0.0
    %146 = vmatpush1.msra.mxu0 %v55
    %147 = vmatprep.subr.mxu0 0.0
    %148 = vmatpush1.msra.mxu0 %v54
    %149 = vmatprep.subr.mxu0 0.0
    %150 = vmatpush1.msra.mxu0 %v53
    %151 = vmatprep.subr.mxu0 0.0
    %152 = vmatpush2.msra.mxu0 0.0
    %153 = vmatprep.subr.mxu0 0.0
    %154 = vmatpush2.msra.mxu0 0.0
    %155 = vmatprep.subr.mxu0 0.0
    %156 = vmatpush2.msra.mxu0 0.0
    %157 = vmatprep.subr.mxu0 0.0
    %158 = vmatpush2.msra.mxu0 0.0
    %159 = vmatprep.subr.mxu0 0.0
    %160 = vmatpush2.msra.mxu0 0.0
    %161 = vmatprep.subr.mxu0 0.0
    %162 = vmatpush2.msra.mxu0 0.0
    %163 = vmatprep.subr.mxu0 0.0
    %164 = vmatpush2.msra.mxu0 0.0
    %165 = vmatprep.subr.mxu0 0.0
    %166 = vmatpush2.msra.mxu0 0.0
    %167 = vmatprep.subr.mxu0 0.0
    %168 = vmatpush2.msra.mxu0 0.0
    %169 = vmatprep.subr.mxu0 0.0
    %170 = vmatpush2.msra.mxu0 0.0
    %171 = vmatprep.subr.mxu0 0.0
    %172 = vmatpush2.msra.mxu0 0.0
    %173 = vmatprep.subr.mxu0 0.0
    %174 = vmatpush2.msra.mxu0 0.0
    %175 = vmatprep.subr.mxu0 0.0
    %176 = vmatpush2.msra.mxu0 0.0
    %177 = vmatprep.subr.mxu0 0.0
    %178 = vmatpush2.msra.mxu0 0.0
    %179 = vmatprep.subr.mxu0 0.0
    %180 = vmatpush2.msra.mxu0 0.0
    %181 = vmatprep.subr.mxu0 0.0
    %182 = vmatpush2.msra.mxu0 0.0
    %183 = vmatprep.mubr.f32.mxu0 0.0
    %184 = vmatmul.mubr.f32.gmra.mxu0 %v117
    %v185 = vpop.f32.mrf.mxu0
    %v186 = vadd.f32 %v98, %v185
    %v187 = vpop.f32.mrf.mxu0
    %188 = vdwg.mxu0
    %v190 = vsel %vm115, %v50, 0
    %192 = vmatprep.subr.mxu0 0.0
    %193 = vmatpush1.msra.mxu0 0.0
    %194 = vmatprep.subr.mxu0 0.0
    %195 = vmatpush1.msra.mxu0 0.0
    %196 = vmatprep.subr.mxu0 0.0
    %197 = vmatpush1.msra.mxu0 0.0
    %198 = vmatprep.subr.mxu0 0.0
    %199 = vmatpush1.msra.mxu0 0.0
    %200 = vmatprep.subr.mxu0 0.0
    %201 = vmatpush1.msra.mxu0 0.0
    %202 = vmatprep.subr.mxu0 0.0
    %203 = vmatpush1.msra.mxu0 0.0
    %204 = vmatprep.subr.mxu0 0.0
    %205 = vmatpush1.msra.mxu0 0.0
    %206 = vmatprep.subr.mxu0 0.0
    %207 = vmatpush1.msra.mxu0 0.0
    %208 = vmatprep.subr.mxu0 0.0
    %209 = vmatpush1.msra.mxu0 %v68
    %210 = vmatprep.subr.mxu0 0.0
    %211 = vmatpush1.msra.mxu0 %v67
    %212 = vmatprep.subr.mxu0 0.0
    %213 = vmatpush1.msra.mxu0 %v66
    %214 = vmatprep.subr.mxu0 0.0
    %215 = vmatpush1.msra.mxu0 %v65
    %216 = vmatprep.subr.mxu0 0.0
    %217 = vmatpush1.msra.mxu0 %v64
    %218 = vmatprep.subr.mxu0 0.0
    %219 = vmatpush1.msra.mxu0 %v63
    %220 = vmatprep.subr.mxu0 0.0
    %221 = vmatpush1.msra.mxu0 %v62
    %222 = vmatprep.subr.mxu0 0.0
    %223 = vmatpush1.msra.mxu0 %v61
    %224 = vmatprep.subr.mxu0 0.0
    %225 = vmatpush2.msra.mxu0 0.0
    %226 = vmatprep.subr.mxu0 0.0
    %227 = vmatpush2.msra.mxu0 0.0
    %228 = vmatprep.subr.mxu0 0.0
    %229 = vmatpush2.msra.mxu0 0.0
    %230 = vmatprep.subr.mxu0 0.0
    %231 = vmatpush2.msra.mxu0 0.0
    %232 = vmatprep.subr.mxu0 0.0
    %233 = vmatpush2.msra.mxu0 0.0
    %234 = vmatprep.subr.mxu0 0.0
    %235 = vmatpush2.msra.mxu0 0.0
    %236 = vmatprep.subr.mxu0 0.0
    %237 = vmatpush2.msra.mxu0 0.0
    %238 = vmatprep.subr.mxu0 0.0
    %239 = vmatpush2.msra.mxu0 0.0
    %240 = vmatprep.subr.mxu0 0.0
    %241 = vmatpush2.msra.mxu0 0.0
    %242 = vmatprep.subr.mxu0 0.0
    %243 = vmatpush2.msra.mxu0 0.0
    %244 = vmatprep.subr.mxu0 0.0
    %245 = vmatpush2.msra.mxu0 0.0
    %246 = vmatprep.subr.mxu0 0.0
    %247 = vmatpush2.msra.mxu0 0.0
    %248 = vmatprep.subr.mxu0 0.0
    %249 = vmatpush2.msra.mxu0 0.0
    %250 = vmatprep.subr.mxu0 0.0
    %251 = vmatpush2.msra.mxu0 0.0
    %252 = vmatprep.subr.mxu0 0.0
    %253 = vmatpush2.msra.mxu0 0.0
    %254 = vmatprep.subr.mxu0 0.0
    %255 = vmatpush2.msra.mxu0 0.0
    %256 = vmatprep.mubr.f32.mxu0 0.0
    %257 = vmatmul.mubr.f32.gmra.mxu0 %v190
    %v258 = vpop.f32.mrf.mxu0
    %v259 = vadd.f32 %v102, %v258
    %v260 = vpop.f32.mrf.mxu0
    %261 = vdwg.mxu0
    %v263 = vsel %vm115, %v51, 0
    %265 = vmatprep.subr.mxu0 0.0
    %266 = vmatpush1.msra.mxu0 0.0
    %267 = vmatprep.subr.mxu0 0.0
    %268 = vmatpush1.msra.mxu0 0.0
    %269 = vmatprep.subr.mxu0 0.0
    %270 = vmatpush1.msra.mxu0 0.0
    %271 = vmatprep.subr.mxu0 0.0
    %272 = vmatpush1.msra.mxu0 0.0
    %273 = vmatprep.subr.mxu0 0.0
    %274 = vmatpush1.msra.mxu0 0.0
    %275 = vmatprep.subr.mxu0 0.0
    %276 = vmatpush1.msra.mxu0 0.0
    %277 = vmatprep.subr.mxu0 0.0
    %278 = vmatpush1.msra.mxu0 0.0
    %279 = vmatprep.subr.mxu0 0.0
    %280 = vmatpush1.msra.mxu0 0.0
    %281 = vmatprep.subr.mxu0 0.0
    %282 = vmatpush1.msra.mxu0 %v76
    %283 = vmatprep.subr.mxu0 0.0
    %284 = vmatpush1.msra.mxu0 %v75
    %285 = vmatprep.subr.mxu0 0.0
    %286 = vmatpush1.msra.mxu0 %v74
    %287 = vmatprep.subr.mxu0 0.0
    %288 = vmatpush1.msra.mxu0 %v73
    %289 = vmatprep.subr.mxu0 0.0
    %290 = vmatpush1.msra.mxu0 %v72
    %291 = vmatprep.subr.mxu0 0.0
    %292 = vmatpush1.msra.mxu0 %v71
    %293 = vmatprep.subr.mxu0 0.0
    %294 = vmatpush1.msra.mxu0 %v70
    %295 = vmatprep.subr.mxu0 0.0
    %296 = vmatpush1.msra.mxu0 %v69
    %297 = vmatprep.subr.mxu0 0.0
    %298 = vmatpush2.msra.mxu0 0.0
    %299 = vmatprep.subr.mxu0 0.0
    %300 = vmatpush2.msra.mxu0 0.0
    %301 = vmatprep.subr.mxu0 0.0
    %302 = vmatpush2.msra.mxu0 0.0
    %303 = vmatprep.subr.mxu0 0.0
    %304 = vmatpush2.msra.mxu0 0.0
    %305 = vmatprep.subr.mxu0 0.0
    %306 = vmatpush2.msra.mxu0 0.0
    %307 = vmatprep.subr.mxu0 0.0
    %308 = vmatpush2.msra.mxu0 0.0
    %309 = vmatprep.subr.mxu0 0.0
    %310 = vmatpush2.msra.mxu0 0.0
    %311 = vmatprep.subr.mxu0 0.0
    %312 = vmatpush2.msra.mxu0 0.0
    %313 = vmatprep.subr.mxu0 0.0
    %314 = vmatpush2.msra.mxu0 0.0
    %315 = vmatprep.subr.mxu0 0.0
    %316 = vmatpush2.msra.mxu0 0.0
    %317 = vmatprep.subr.mxu0 0.0
    %318 = vmatpush2.msra.mxu0 0.0
    %319 = vmatprep.subr.mxu0 0.0
    %320 = vmatpush2.msra.mxu0 0.0
    %321 = vmatprep.subr.mxu0 0.0
    %322 = vmatpush2.msra.mxu0 0.0
    %323 = vmatprep.subr.mxu0 0.0
    %324 = vmatpush2.msra.mxu0 0.0
    %325 = vmatprep.subr.mxu0 0.0
    %326 = vmatpush2.msra.mxu0 0.0
    %327 = vmatprep.subr.mxu0 0.0
    %328 = vmatpush2.msra.mxu0 0.0
    %329 = vmatprep.mubr.f32.mxu0 0.0
    %330 = vmatmul.mubr.f32.gmra.mxu0 %v263
    %v331 = vpop.f32.mrf.mxu0
    %v332 = vadd.f32 %v106, %v331
    %v333 = vpop.f32.mrf.mxu0
    %334 = vdwg.mxu0
    %v336 = vsel %vm115, %v52, 0
    %338 = vmatprep.subr.mxu0 0.0
    %339 = vmatpush1.msra.mxu0 0.0
    %340 = vmatprep.subr.mxu0 0.0
    %341 = vmatpush1.msra.mxu0 0.0
    %342 = vmatprep.subr.mxu0 0.0
    %343 = vmatpush1.msra.mxu0 0.0
    %344 = vmatprep.subr.mxu0 0.0
    %345 = vmatpush1.msra.mxu0 0.0
    %346 = vmatprep.subr.mxu0 0.0
    %347 = vmatpush1.msra.mxu0 0.0
    %348 = vmatprep.subr.mxu0 0.0
    %349 = vmatpush1.msra.mxu0 0.0
    %350 = vmatprep.subr.mxu0 0.0
    %351 = vmatpush1.msra.mxu0 0.0
    %352 = vmatprep.subr.mxu0 0.0
    %353 = vmatpush1.msra.mxu0 0.0
    %354 = vmatprep.subr.mxu0 0.0
    %355 = vmatpush1.msra.mxu0 %v84
    %356 = vmatprep.subr.mxu0 0.0
    %357 = vmatpush1.msra.mxu0 %v83
    %358 = vmatprep.subr.mxu0 0.0
    %359 = vmatpush1.msra.mxu0 %v82
    %360 = vmatprep.subr.mxu0 0.0
    %361 = vmatpush1.msra.mxu0 %v81
    %362 = vmatprep.subr.mxu0 0.0
    %363 = vmatpush1.msra.mxu0 %v80
    %364 = vmatprep.subr.mxu0 0.0
    %365 = vmatpush1.msra.mxu0 %v79
    %366 = vmatprep.subr.mxu0 0.0
    %367 = vmatpush1.msra.mxu0 %v78
    %368 = vmatprep.subr.mxu0 0.0
    %369 = vmatpush1.msra.mxu0 %v77
    %370 = vmatprep.subr.mxu0 0.0
    %371 = vmatpush2.msra.mxu0 0.0
    %372 = vmatprep.subr.mxu0 0.0
    %373 = vmatpush2.msra.mxu0 0.0
    %374 = vmatprep.subr.mxu0 0.0
    %375 = vmatpush2.msra.mxu0 0.0
    %376 = vmatprep.subr.mxu0 0.0
    %377 = vmatpush2.msra.mxu0 0.0
    %378 = vmatprep.subr.mxu0 0.0
    %379 = vmatpush2.msra.mxu0 0.0
    %380 = vmatprep.subr.mxu0 0.0
    %381 = vmatpush2.msra.mxu0 0.0
    %382 = vmatprep.subr.mxu0 0.0
    %383 = vmatpush2.msra.mxu0 0.0
    %384 = vmatprep.subr.mxu0 0.0
    %385 = vmatpush2.msra.mxu0 0.0
    %386 = vmatprep.subr.mxu0 0.0
    %387 = vmatpush2.msra.mxu0 0.0
    %388 = vmatprep.subr.mxu0 0.0
    %389 = vmatpush2.msra.mxu0 0.0
    %390 = vmatprep.subr.mxu0 0.0
    %391 = vmatpush2.msra.mxu0 0.0
    %392 = vmatprep.subr.mxu0 0.0
    %393 = vmatpush2.msra.mxu0 0.0
    %394 = vmatprep.subr.mxu0 0.0
    %395 = vmatpush2.msra.mxu0 0.0
    %396 = vmatprep.subr.mxu0 0.0
    %397 = vmatpush2.msra.mxu0 0.0
    %398 = vmatprep.subr.mxu0 0.0
    %399 = vmatpush2.msra.mxu0 0.0
    %400 = vmatprep.subr.mxu0 0.0
    %401 = vmatpush2.msra.mxu0 0.0
    %402 = vmatprep.mubr.f32.mxu0 0.0
    %403 = vmatmul.mubr.f32.gmra.mxu0 %v336
    %v404 = vpop.f32.mrf.mxu0
    %v405 = vadd.f32 %v110, %v404
    %v406 = vpop.f32.mrf.mxu0
    %407 = vdwg.mxu0
    %v408 = vmax.f32 %v186, 0.0
    %v409 = vmax.f32 %v259, 0.0
    %v410 = vmax.f32 %v332, 0.0
    %v411 = vmax.f32 %v405, 0.0
    %v414 = vunpack.c.l.s4 1966171168
    %v415 = vunpack.c.0.s8 %v414
    %v416 = vlaneseq
    %v417 = vshrl.u32 %v416, 7
    %v418 = vsub.s32 %v415, %v417
    %v419 = vrot.slane %v89, %v418
    %v420 = vcombine.high %v419, %v419
    %v422 = vunpack.c.l.s4 1966171168
    %v423 = vunpack.c.0.s8 %v422
    %v424 = vlaneseq
    %v425 = vshrl.u32 %v424, 7
    %v426 = vsub.s32 %v423, %v425
    %v427 = vrot.slane %v419, %v426
    %v429 = vunpack.c.l.s4 1966171168
    %v430 = vunpack.c.0.s8 %v429
    %v431 = vlaneseq
    %v432 = vshrl.u32 %v431, 7
    %v433 = vsub.s32 %v430, %v432
    %v434 = vrot.slane %v420, %v433
    %v435 = vcombine.high %v427, %v427
    %v436 = vcombine.high %v434, %v434
    %v437 = vlaneseq
    %v438 = vshrl.u32 %v437, 7
    %v439 = vsub.s32 0, %v438
    %v440 = vrot.slane %v427, %v439
    %v441 = vlaneseq
    %v442 = vshrl.u32 %v441, 7
    %v443 = vsub.s32 0, %v442
    %v444 = vrot.slane %v434, %v443
    %v445 = vlaneseq
    %v446 = vshrl.u32 %v445, 7
    %v447 = vsub.s32 0, %v446
    %v448 = vrot.slane %v435, %v447
    %v449 = vlaneseq
    %v450 = vshrl.u32 %v449, 7
    %v451 = vsub.s32 0, %v450
    %v452 = vrot.slane %v436, %v451
    %v457 = vmul.f32 %v408, %v440
    %v458 = vmul.f32 %v409, %v444
    %v459 = vmul.f32 %v410, %v448
    %v460 = vmul.f32 %v411, %v452
    %v461 = vsel %vm115, %v457, 0.0
    %462 = vadd.xlane.f32.xlu0 %v461
    %v463 = vpop.xlane.xlu0 %462
    %v464 = vsel %vm115, %v458, 0.0
    %465 = vadd.xlane.f32.xlu0 %v464
    %v466 = vpop.xlane.xlu0 %465
    %v467 = vsel %vm115, %v459, 0.0
    %468 = vadd.xlane.f32.xlu0 %v467
    %v469 = vpop.xlane.xlu0 %468
    %v470 = vsel %vm115, %v460, 0.0
    %471 = vadd.xlane.f32.xlu0 %v470
    %v472 = vpop.xlane.xlu0 %471
    %474 = vset.pattern.permute.xlu0 0
    %475 = vperm.xlu0 %474, %v90
    %v476 = vpop.permute.xlu0 %475
    %v477 = vlaneseq
    %v478 = vshrl.u32 %v477, 7
    %v479 = vsub.s32 0, %v478
    %v480 = vrot.slane %v476, %v479
    %v481 = vlaneseq
    %v482 = vshrl.u32 %v481, 7
    %v483 = vsub.s32 1, %v482
    %v484 = vrot.slane %v476, %v483
    %v485 = vlaneseq
    %v486 = vshrl.u32 %v485, 7
    %v487 = vsub.s32 2, %v486
    %v488 = vrot.slane %v476, %v487
    %v489 = vlaneseq
    %v490 = vshrl.u32 %v489, 7
    %v491 = vsub.s32 3, %v490
    %v492 = vrot.slane %v476, %v491
    %v497 = vadd.f32 %v463, %v480
    %v498 = vadd.f32 %v466, %v484
    %v499 = vadd.f32 %v469, %v488
    %v500 = vadd.f32 %v472, %v492
    %505 = vset.pattern.permute.xlu0 0
    %506 = vperm.xlu0 %505, %v497
    %v507 = vpop.permute.xlu0 %506
    %508 = vset.pattern.permute.xlu0 0
    %509 = vperm.xlu0 %508, %v498
    %v510 = vpop.permute.xlu0 %509
    %511 = vset.pattern.permute.xlu0 0
    %512 = vperm.xlu0 %511, %v499
    %v513 = vpop.permute.xlu0 %512
    %514 = vset.pattern.permute.xlu0 0
    %515 = vperm.xlu0 %514, %v500
    %v516 = vpop.permute.xlu0 %515
    %v517 = vlaneseq
    %v518 = vand.u32 %v517, 127
    %v519 = vlaneseq
    %v520 = vshrl.u32 %v519, 7
    %v521 = vsub.s32 %v518, %v520
    %v522 = vrot.slane %v507, %v521
    %v523 = vlaneseq
    %v524 = vshrl.u32 %v523, 7
    %v525 = vsub.s32 %v518, %v524
    %v526 = vrot.slane %v510, %v525
    %v527 = vlaneseq
    %v528 = vshrl.u32 %v527, 7
    %v529 = vsub.s32 %v518, %v528
    %v530 = vrot.slane %v513, %v529
    %v531 = vlaneseq
    %v532 = vshrl.u32 %v531, 7
    %v533 = vsub.s32 %v518, %v532
    %v534 = vrot.slane %v516, %v533
    %vm535 = vcmask 1041409
    %v536 = vsel %vm535, %v526, %v522
    %vm537 = vcmask 1042434
    %v538 = vsel %vm537, %v530, %v536
    %vm539 = vcmask 1043459
    %v540 = vsel %vm539, %v534, %v538
    %vm542 = vcmask 60416
    %543 = vst.msk [vmem:[#allocation7] sm:$0xf] %vm542, %v540
    // Predicated region
    $region30: #{tpu_custom_call.1} parent=1 // pred_check
      _
    $region31: #{tpu_custom_call.1} parent=1 // pred_check_branch
      %545 = sbr.rel (0) target = $region33
    $region32: #{tpu_custom_call.1} parent=1 // pred_region
      %s547 = ssub.s32 64, 64
      %548 = vsyncadd [#allocation4], %s547
      %s550 = sshll.u32 [#allocation7], 4
      %s551 = int_to_ptr.vmem [resolvable:$true] %s550
      %553 = dma.vmem_to_hbm [thread:$0]  %s551, 64, %s5, [#allocation4]
    $region33: #{tpu_custom_call.1} parent=1 // pred_fallthru
      _
    // Predicated region
    $region34: #{tpu_custom_call.1} parent=1 // pred_check
      _
    $region35: #{tpu_custom_call.1} parent=1 // pred_check_branch
      %555 = sbr.rel (0) target = $region37
    $region36: #{tpu_custom_call.1} parent=1 // pred_region
      %556 = dma.done [#allocation4], 64
    $region37: #{tpu_custom_call.1} parent=1 // pred_fallthru
      _
    %557 = vsyncpa [#allocation3], 1
    %558 = vsyncpa [#allocation6], 1
    %559 = vsyncpa [#allocation4], 1

</llo_original>
